<compile_context>
chip_gen: v7x
topology: tpu7x:2x2x1
jax: 0.10.0
libtpu: 0.0.40
codegen_flags: <defaults>
</compile_context>

<pallas_src>
import jax
import jax.numpy as jnp
from jax.experimental import pallas as pl
from jax.experimental.pallas import tpu as pltpu

INPUT_SIZE = 9
HIDDEN_SIZE = 5
OUTPUT_SIZE = 1


def mlp_kernel(x_ref, w1t_ref, b1_ref, w2t_ref, b2_ref, o_ref):
    """Fused Linear -> ReLU -> Linear on one lane-dense batch tile.

    x_ref  : VMEM (INPUT_SIZE, TB)        f32  -- features on sublanes, batch on lanes
    w1t_ref: VMEM (HIDDEN_SIZE, INPUT_SIZE) f32  (w1 transposed)
    b1_ref : VMEM (HIDDEN_SIZE, 1)        f32
    w2t_ref: VMEM (OUTPUT_SIZE, HIDDEN_SIZE) f32 (w2 transposed)
    b2_ref : SMEM (OUTPUT_SIZE,)          f32
    o_ref  : VMEM (OUTPUT_SIZE, TB)       f32  -- lane-dense output tile
    """
    x = x_ref[...]                                               # (9, TB)

    # Hidden layer on the MXU; bias is a (5,1) lane-broadcast add, then ReLU.
    h = jnp.dot(w1t_ref[...], x, preferred_element_type=jnp.float32)   # (5, TB)
    h = jnp.maximum(h + b1_ref[...], 0.0)

    # Output layer on the MXU; b2 is a single SMEM scalar broadcast.
    y = jnp.dot(w2t_ref[...], h, preferred_element_type=jnp.float32)   # (1, TB)
    o_ref[...] = y + b2_ref[0]


def ann_forward_featmajor(xT, w1, b1, w2, b2, *, tile_b=16384):
    """Core kernel entry point.

    xT: (INPUT_SIZE, B) f32, feature-major (no wrapper transpose needed).
    Returns (OUTPUT_SIZE, B) f32.
    Params use math orientation: out = relu(x @ w1 + b1) @ w2 + b2.
    """
    assert xT.shape[0] == INPUT_SIZE
    B = xT.shape[1]

    # Clamp the tile so small batches don't over-pad; keep it a lane multiple.
    tile_b = min(tile_b, pl.cdiv(B, 128) * 128)
    assert tile_b % 128 == 0, "batch tile must be a multiple of 128 lanes"
    n_tiles = pl.cdiv(B, tile_b)
    Bp = n_tiles * tile_b
    if Bp != B:
        xT = jnp.pad(xT, ((0, 0), (0, Bp - B)))                  # (9, Bp)

    # Tiny parameter tensors, laid out for the in-kernel matmuls.
    w1t = w1.T.astype(jnp.float32)                               # (5, 9)
    b1c = b1.reshape(HIDDEN_SIZE, 1).astype(jnp.float32)         # (5, 1)
    w2t = w2.T.astype(jnp.float32)                               # (1, 5)
    b2f = b2.reshape(OUTPUT_SIZE).astype(jnp.float32)            # (1,)

    cost = pl.CostEstimate(
        flops=2 * Bp * (INPUT_SIZE * HIDDEN_SIZE + HIDDEN_SIZE * OUTPUT_SIZE),
        transcendentals=0,
        bytes_accessed=4 * (Bp * (INPUT_SIZE + OUTPUT_SIZE)
                            + INPUT_SIZE * HIDDEN_SIZE + HIDDEN_SIZE
                            + HIDDEN_SIZE * OUTPUT_SIZE + OUTPUT_SIZE),
    )

    out_T = pl.pallas_call(
        mlp_kernel,
        out_shape=jax.ShapeDtypeStruct((OUTPUT_SIZE, Bp), jnp.float32),
        grid=(n_tiles,),
        in_specs=[
            # x: tiled over the batch (lane) axis; features stay whole.
            pl.BlockSpec((INPUT_SIZE, tile_b), lambda i: (0, i)),
            # Weights / hidden bias: tiny whole arrays resident in VMEM.
            pl.BlockSpec(memory_space=pltpu.MemorySpace.VMEM),
            pl.BlockSpec(memory_space=pltpu.MemorySpace.VMEM),
            pl.BlockSpec(memory_space=pltpu.MemorySpace.VMEM),
            # Output bias: single scalar in SMEM.
            pl.BlockSpec(memory_space=pltpu.MemorySpace.SMEM),
        ],
        out_specs=pl.BlockSpec((OUTPUT_SIZE, tile_b), lambda i: (0, i)),
        compiler_params=pltpu.CompilerParams(
            # Batch grid axis is independent -> shard across TCs on v7x.
            dimension_semantics=("parallel",),
            # Footprint is ~2*(tile_b*40B) << 32 MiB, so the default VMEM
            # scoped limit is fine on every generation (incl. v7x's 64 MiB).
        ),
        cost_estimate=cost,
    )(xT, w1t, b1c, w2t, b2f)

    return out_T[:, :B]                                          # (1, B)


def ann_forward(x, w1, b1, w2, b2, *, tile_b=16384):
    """PyTorch-contract wrapper: x (B, 9) f32 -> (B, 1) f32.

    Matches Linear(9,5) -> ReLU -> Linear(5,1).
    NOTE: the x.T relayout here is an extra HBM round trip; in a real pipeline
    fuse it into the producer of x (or call ann_forward_featmajor directly).
    """
    out_T = ann_forward_featmajor(x.T, w1, b1, w2, b2, tile_b=tile_b)
    return out_T.T                                               # (B, 1)


def init_params(key):
    # Deterministic synthetic init mirroring PyTorch Linear's U(-1/sqrt(fan_in), ...).
    k1, k2, k3, k4 = jax.random.split(key, 4)
    s1 = 1.0 / jnp.sqrt(INPUT_SIZE)
    s2 = 1.0 / jnp.sqrt(HIDDEN_SIZE)
    w1 = jax.random.uniform(k1, (INPUT_SIZE, HIDDEN_SIZE), jnp.float32, -s1, s1)
    b1 = jax.random.uniform(k2, (1, HIDDEN_SIZE), jnp.float32, -s1, s1)
    w2 = jax.random.uniform(k3, (HIDDEN_SIZE, OUTPUT_SIZE), jnp.float32, -s2, s2)
    b2 = jax.random.uniform(k4, (1, OUTPUT_SIZE), jnp.float32, -s2, s2)
    return w1, b1, w2, b2


if __name__ == "__main__":
    key = jax.random.PRNGKey(0)
    k_x, k_p = jax.random.split(key)

    batch = 200   # small; deliberately not a multiple of the tile (tests padding)
    x = jax.random.normal(k_x, (batch, INPUT_SIZE), jnp.float32)
    w1, b1, w2, b2 = init_params(k_p)

    # tile_b=128 so the tiny test still exercises a multi-step batch grid;
    # production default is tile_b=16384.
    out = ann_forward(x, w1, b1, w2, b2, tile_b=128)
    jax.block_until_ready(out)

    # Pure-JAX reference check (tolerance covers MXU f32 multi-pass rounding).
    ref = jnp.maximum(x @ w1 + b1, 0.0) @ w2 + b2
    assert out.shape == (batch, OUTPUT_SIZE)
    assert jnp.allclose(out, ref, atol=1e-2, rtol=1e-2), "mismatch vs reference"
    print("KERNEL_OK")
</pallas_src>

<mosaic_0001>
module attributes {stable_mosaic.version = 11 : i64} {
  func.func @mlp_kernel(%arg0: i32, %arg1: memref<9x128xf32, #tpu.memory_space<vmem>>, %arg2: memref<5x9xf32, #tpu.memory_space<vmem>>, %arg3: memref<5x1xf32, #tpu.memory_space<vmem>>, %arg4: memref<1x5xf32, #tpu.memory_space<vmem>>, %arg5: memref<1xf32, #tpu.memory_space<smem>>, %arg6: memref<1x128xf32, #tpu.memory_space<vmem>>) attributes {dimension_semantics = [#tpu.dimension_semantics<parallel>], iteration_bounds = array<i64: 2>, scalar_prefetch = 0 : i64, scratch_operands = 0 : i64, tpu.core_type = #tpu.core_type<tc>, window_params = [{transform_indices = @transform_0, window_bounds = array<i64: 9, 128>}, {pipeline_mode = #tpu.pipeline_mode<synchronous>, transform_indices = @transform_1, window_bounds = array<i64: 5, 9>}, {pipeline_mode = #tpu.pipeline_mode<synchronous>, transform_indices = @transform_2, window_bounds = array<i64: 5, 1>}, {pipeline_mode = #tpu.pipeline_mode<synchronous>, transform_indices = @transform_3, window_bounds = array<i64: 1, 5>}, {transform_indices = @transform_4, window_bounds = array<i64: 1>}, {transform_indices = @transform_5, window_bounds = array<i64: 1, 128>}]} {
    %c0 = arith.constant 0 : index
    %c0_0 = arith.constant 0 : index
    %0 = vector.load %arg1[%c0, %c0_0] : memref<9x128xf32, #tpu.memory_space<vmem>>, vector<9x128xf32>
    %c0_1 = arith.constant 0 : index
    %c0_2 = arith.constant 0 : index
    %1 = vector.load %arg2[%c0_1, %c0_2] : memref<5x9xf32, #tpu.memory_space<vmem>>, vector<5x9xf32>
    %cst = arith.constant dense<0.000000e+00> : vector<5x128xf32>
    %2 = tpu.matmul %1, %0, %cst {dimension_numbers = #tpu.dot_dimension_numbers<[1], [0], [0], [1], [0, 0, 1, 1], [], []>} : vector<5x9xf32>, vector<9x128xf32>, vector<5x128xf32> -> vector<5x128xf32>
    %c0_3 = arith.constant 0 : index
    %c0_4 = arith.constant 0 : index
    %3 = vector.load %arg3[%c0_3, %c0_4] : memref<5x1xf32, #tpu.memory_space<vmem>>, vector<5x1xf32>
    %4 = vector.broadcast %3 : vector<5x1xf32> to vector<5x128xf32>
    %5 = arith.addf %2, %4 : vector<5x128xf32>
    %cst_5 = arith.constant 0.000000e+00 : f32
    %6 = vector.broadcast %cst_5 : f32 to vector<5x128xf32>
    %7 = arith.maximumf %5, %6 : vector<5x128xf32>
    %c0_6 = arith.constant 0 : index
    %c0_7 = arith.constant 0 : index
    %8 = vector.load %arg4[%c0_6, %c0_7] : memref<1x5xf32, #tpu.memory_space<vmem>>, vector<1x5xf32>
    %cst_8 = arith.constant dense<0.000000e+00> : vector<1x128xf32>
    %9 = tpu.matmul %8, %7, %cst_8 {dimension_numbers = #tpu.dot_dimension_numbers<[1], [0], [0], [1], [0, 0, 1, 1], [], []>} : vector<1x5xf32>, vector<5x128xf32>, vector<1x128xf32> -> vector<1x128xf32>
    %c0_9 = arith.constant 0 : index
    %10 = memref.load %arg5[%c0_9] : memref<1xf32, #tpu.memory_space<smem>>
    %11 = vector.broadcast %10 : f32 to vector<1x128xf32>
    %12 = arith.addf %9, %11 : vector<1x128xf32>
    %c0_10 = arith.constant 0 : index
    %c0_11 = arith.constant 0 : index
    %13 = vector.load %arg6[%c0_10, %c0_11] : memref<1x128xf32, #tpu.memory_space<vmem>>, vector<1x128xf32>
    tpu.vector_store %arg6[%c0_10, %c0_11], %12 {strides = array<i32>} : memref<1x128xf32, #tpu.memory_space<vmem>>, vector<1x128xf32>,
    return
  }
  func.func @transform_0(%arg0: i32) -> (i32, i32) {
    %c0_i32 = arith.constant 0 : i32
    %c0_i32_0 = arith.constant 0 : i32
    return %c0_i32, %arg0 : i32, i32
  }
  func.func @transform_1(%arg0: i32) -> (i32, i32) {
    %c0_i32 = arith.constant 0 : i32
    %c0_i32_0 = arith.constant 0 : i32
    %c0_i32_1 = arith.constant 0 : i32
    return %c0_i32, %c0_i32_0 : i32, i32
  }
  func.func @transform_2(%arg0: i32) -> (i32, i32) {
    %c0_i32 = arith.constant 0 : i32
    %c0_i32_0 = arith.constant 0 : i32
    %c0_i32_1 = arith.constant 0 : i32
    return %c0_i32, %c0_i32_0 : i32, i32
  }
  func.func @transform_3(%arg0: i32) -> (i32, i32) {
    %c0_i32 = arith.constant 0 : i32
    %c0_i32_0 = arith.constant 0 : i32
    %c0_i32_1 = arith.constant 0 : i32
    return %c0_i32, %c0_i32_0 : i32, i32
  }
  func.func @transform_4(%arg0: i32) -> i32 {
    %c0_i32 = arith.constant 0 : i32
    %c0_i32_0 = arith.constant 0 : i32
    return %c0_i32 : i32
  }
  func.func @transform_5(%arg0: i32) -> (i32, i32) {
    %c0_i32 = arith.constant 0 : i32
    %c0_i32_0 = arith.constant 0 : i32
    return %c0_i32, %arg0 : i32, i32
  }
}

</mosaic_0001>

<llo_original>
// kernel: tpu_custom_call.1
$region0: #{tpu_custom_call.1}
  #allocation0 [shape = 'u32[]', space=smem, size = 0x4, offset = 0x4, fixed_abs, tag = 'smem constant byte address 0x4 - core index']
  #allocation1 [shape = 'u32[144,128]{1,0:T(1,128)}', space=vmem, size = 0x12000, scoped, tag = 'internal scratch']
  #allocation2 [shape = 'f32[1]{0:T(128)S(6)}', space=smem, size = 0x200, scoped, tag = 'scoped memory for tpu_custom_call.1']
  %s0 = inlined_call_operand.hbm [shape: f32[9,256], index: 0, kind: input, shape index: {}]
  %s1 = inlined_call_operand.vmem [shape: f32[5,9], index: 1, kind: input, shape index: {}]
  %s2 = inlined_call_operand.vmem [shape: f32[5,1], index: 2, kind: input, shape index: {}]
  %s3 = inlined_call_operand.vmem [shape: f32[1,5], index: 3, kind: input, shape index: {}]
  %s4 = inlined_call_operand.<no memory space> [shape: f32[1], index: 4, kind: input, shape index: {}]
  %s5 = inlined_call_operand.hbm [shape: f32[1,256], index: 5, kind: output, shape index: {}]
  %s6 = sld [smem:[#allocation0]]
  $region57: #{tpu_custom_call.1} parent=0
    _
  %s8 = ssub.s32 1, %s6
  %s9 = scalar_select 0, %s8, %s6
  %10 = sst [smem:[#allocation2]] %s4
  $region1: #{tpu_custom_call.1} parent=0
    #allocation3 [shape = 'u8[16384]{0}', space=vmem, size = 0x4000, scoped, tag = 'input window, operand 0']
    #allocation4 [shape = 's32[2]{0}', space=sflag, size = 0x8, scoped, tag = 'scoped memory for tpu_custom_call.1']
    #allocation5 [shape = 's32[2]{0}', space=sflag, size = 0x8, scoped, tag = 'scoped memory for tpu_custom_call.1']
    #allocation6 [shape = 'u8[1024]{0}', space=vmem, size = 0x400, scoped, tag = 'output window, operand 0']
    %11 = vsyncpa [#allocation4], 0
    %s12 = scalar_lea.sflag [#allocation4], 1
    %13 = vsyncpa %s12, 0
    %14 = vsyncpa [#allocation5], 0
    %s15 = scalar_lea.sflag [#allocation5], 1
    %16 = vsyncpa %s15, 0
    loop: start=0, step=1, limit=4
    $region2: #{tpu_custom_call.1} parent=1 // loop_pre_header
      _
    $region3: #{tpu_custom_call.1} parent=1 // loop_header
      %s18 = sphi 0, %s22
      %p19 = scmp.ge.s32.totalorder %s18, 4
      %s28 = sphi 0, %s30
      %s31 = sphi 0, %s28
      %s32 = sphi 0, %s31
      %s48 = sphi 0, %s32
      %s52 = sphi 0, %s52
      %s54 = sphi 0, %s52
      %s55 = sphi 0, %s54
      %s69 = sphi 0, %s55
      %s73 = sphi 0, %s73
      %s75 = sphi 0, %s73
      %s76 = sphi 0, %s75
      %s90 = sphi 0, %s76
      %s94 = sphi 0, %s94
      %s96 = sphi 0, %s94
      %s97 = sphi 0, %s96
      %s111 = sphi 0, %s97
      %s115 = sphi 0, %s115
      %s117 = sphi 0, %s115
      %s118 = sphi 0, %s117
      %s132 = sphi 0, %s118
      %s138 = sphi 0, %s140
      %s141 = sphi 0, %s138
      %s142 = sphi 0, %s141
      %s158 = sphi 0, %s142
    $region4: #{tpu_custom_call.1} parent=1 // loop_header_branch
      %21 = sbr.rel (%p19) target = $region8
    $region5: #{tpu_custom_call.1} parent=1 // loop_body
      %s23 = ssub.s32 %s18, 1
      %s24 = ssub.s32 %s18, 2
      %s25 = sadd.s32 %s18, 1
      %s26 = ssub.s32 %s18, %s25
      %p27 = scmp.eq.s32.totalorder %s26, 0
      %s29 = sadd.s32 %s28, 1
      %s30 = scalar_select %p27, %s28, %s29
      %p33 = pneg %p27
      %p34 = scmp.eq.s32.totalorder %s18, 1
      %p35 = por %p33, %p34
      %p36 = scmp.ne.s32.totalorder %s28, %s31
      %p37 = scmp.eq.s32.totalorder %s18, 0
      %p38 = por %p36, %p37
      %p39 = scmp.ne.s32.totalorder %s28, %s31
      %p40 = scmp.eq.s32.totalorder %s23, 1
      %p41 = por %p39, %p40
      %p42 = scmp.ne.s32.totalorder %s31, %s32
      %p43 = scmp.eq.s32.totalorder %s23, 0
      %p44 = por %p42, %p43
      %p45 = scmp.ne.s32.totalorder %s31, %s32
      %p46 = scmp.eq.s32.totalorder %s24, 1
      %p47 = por %p45, %p46
      %p49 = scmp.ne.s32.totalorder %s32, %s48
      %p50 = scmp.eq.s32.totalorder %s24, 0
      %p51 = por %p49, %p50
      %s53 = sadd.s32 %s52, 1
      %p56 = scmp.eq.s32.totalorder %s18, 1
      %p57 = scmp.ne.s32.totalorder %s52, %s54
      %p58 = scmp.eq.s32.totalorder %s18, 0
      %p59 = por %p57, %p58
      %p60 = scmp.ne.s32.totalorder %s52, %s54
      %p61 = scmp.eq.s32.totalorder %s23, 1
      %p62 = por %p60, %p61
      %p63 = scmp.ne.s32.totalorder %s54, %s55
      %p64 = scmp.eq.s32.totalorder %s23, 0
      %p65 = por %p63, %p64
      %p66 = scmp.ne.s32.totalorder %s54, %s55
      %p67 = scmp.eq.s32.totalorder %s24, 1
      %p68 = por %p66, %p67
      %p70 = scmp.ne.s32.totalorder %s55, %s69
      %p71 = scmp.eq.s32.totalorder %s24, 0
      %p72 = por %p70, %p71
      %s74 = sadd.s32 %s73, 1
      %p77 = scmp.eq.s32.totalorder %s18, 1
      %p78 = scmp.ne.s32.totalorder %s73, %s75
      %p79 = scmp.eq.s32.totalorder %s18, 0
      %p80 = por %p78, %p79
      %p81 = scmp.ne.s32.totalorder %s73, %s75
      %p82 = scmp.eq.s32.totalorder %s23, 1
      %p83 = por %p81, %p82
      %p84 = scmp.ne.s32.totalorder %s75, %s76
      %p85 = scmp.eq.s32.totalorder %s23, 0
      %p86 = por %p84, %p85
      %p87 = scmp.ne.s32.totalorder %s75, %s76
      %p88 = scmp.eq.s32.totalorder %s24, 1
      %p89 = por %p87, %p88
      %p91 = scmp.ne.s32.totalorder %s76, %s90
      %p92 = scmp.eq.s32.totalorder %s24, 0
      %p93 = por %p91, %p92
      %s95 = sadd.s32 %s94, 1
      %p98 = scmp.eq.s32.totalorder %s18, 1
      %p99 = scmp.ne.s32.totalorder %s94, %s96
      %p100 = scmp.eq.s32.totalorder %s18, 0
      %p101 = por %p99, %p100
      %p102 = scmp.ne.s32.totalorder %s94, %s96
      %p103 = scmp.eq.s32.totalorder %s23, 1
      %p104 = por %p102, %p103
      %p105 = scmp.ne.s32.totalorder %s96, %s97
      %p106 = scmp.eq.s32.totalorder %s23, 0
      %p107 = por %p105, %p106
      %p108 = scmp.ne.s32.totalorder %s96, %s97
      %p109 = scmp.eq.s32.totalorder %s24, 1
      %p110 = por %p108, %p109
      %p112 = scmp.ne.s32.totalorder %s97, %s111
      %p113 = scmp.eq.s32.totalorder %s24, 0
      %p114 = por %p112, %p113
      %s116 = sadd.s32 %s115, 1
      %p119 = scmp.eq.s32.totalorder %s18, 1
      %p120 = scmp.ne.s32.totalorder %s115, %s117
      %p121 = scmp.eq.s32.totalorder %s18, 0
      %p122 = por %p120, %p121
      %p123 = scmp.ne.s32.totalorder %s115, %s117
      %p124 = scmp.eq.s32.totalorder %s23, 1
      %p125 = por %p123, %p124
      %p126 = scmp.ne.s32.totalorder %s117, %s118
      %p127 = scmp.eq.s32.totalorder %s23, 0
      %p128 = por %p126, %p127
      %p129 = scmp.ne.s32.totalorder %s117, %s118
      %p130 = scmp.eq.s32.totalorder %s24, 1
      %p131 = por %p129, %p130
      %p133 = scmp.ne.s32.totalorder %s118, %s132
      %p134 = scmp.eq.s32.totalorder %s24, 0
      %p135 = por %p133, %p134
      %s136 = ssub.s32 %s18, %s25
      %p137 = scmp.eq.s32.totalorder %s136, 0
      %s139 = sadd.s32 %s138, 1
      %s140 = scalar_select %p137, %s138, %s139
      %p143 = pneg %p137
      %p144 = scmp.eq.s32.totalorder %s18, 1
      %p145 = por %p143, %p144
      %p146 = scmp.ne.s32.totalorder %s138, %s141
      %p147 = scmp.eq.s32.totalorder %s18, 0
      %p148 = por %p146, %p147
      %p149 = scmp.ne.s32.totalorder %s138, %s141
      %p150 = scmp.eq.s32.totalorder %s23, 1
      %p151 = por %p149, %p150
      %p152 = scmp.ne.s32.totalorder %s141, %s142
      %p153 = scmp.eq.s32.totalorder %s23, 0
      %p154 = por %p152, %p153
      %p155 = scmp.ne.s32.totalorder %s141, %s142
      %p156 = scmp.eq.s32.totalorder %s24, 1
      %p157 = por %p155, %p156
      %p159 = scmp.ne.s32.totalorder %s142, %s158
      %p160 = scmp.eq.s32.totalorder %s24, 0
      %p161 = por %p159, %p160
      %p162 = scmp.le.s32.totalorder 1, %s18
      %p163 = scmp.lt.s32.totalorder %s18, 3
      %p164 = pnand %p162, %p163
      %p165 = pneg %p164
      // Predicated region
      $region9: #{tpu_custom_call.1} parent=5 // pred_check
        _
      $region10: #{tpu_custom_call.1} parent=5 // pred_check_branch
        %167 = sbr.rel (%p164) target = $region12
      $region11: #{tpu_custom_call.1} parent=5 // pred_region
        %s168 = ssub.s32 %s18, 1
        // Predicated region
        $region13: #{tpu_custom_call.1} parent=11 // pred_check
          %p169 = pneg %p65
        $region14: #{tpu_custom_call.1} parent=11 // pred_check_branch
          %171 = sbr.rel (%p169) target = $region16
        $region15: #{tpu_custom_call.1} parent=11 // pred_region
          _
        $region16: #{tpu_custom_call.1} parent=11 // pred_fallthru
          _
        // Predicated region
        $region17: #{tpu_custom_call.1} parent=11 // pred_check
          %p172 = pneg %p86
        $region18: #{tpu_custom_call.1} parent=11 // pred_check_branch
          %174 = sbr.rel (%p172) target = $region20
        $region19: #{tpu_custom_call.1} parent=11 // pred_region
          _
        $region20: #{tpu_custom_call.1} parent=11 // pred_fallthru
          _
        // Predicated region
        $region21: #{tpu_custom_call.1} parent=11 // pred_check
          %p175 = pneg %p107
        $region22: #{tpu_custom_call.1} parent=11 // pred_check_branch
          %177 = sbr.rel (%p175) target = $region24
        $region23: #{tpu_custom_call.1} parent=11 // pred_region
          _
        $region24: #{tpu_custom_call.1} parent=11 // pred_fallthru
          _
        // Predicated region
        $region25: #{tpu_custom_call.1} parent=11 // pred_check
          %p178 = pneg %p128
        $region26: #{tpu_custom_call.1} parent=11 // pred_check_branch
          %180 = sbr.rel (%p178) target = $region28
        $region27: #{tpu_custom_call.1} parent=11 // pred_region
          _
        $region28: #{tpu_custom_call.1} parent=11 // pred_fallthru
          _
      $region12: #{tpu_custom_call.1} parent=5 // pred_fallthru
        _
      %p181 = scmp.lt.s32.totalorder %s18, 2
      // Predicated region
      $region29: #{tpu_custom_call.1} parent=5 // pred_check
        %p182 = pneg %p181
      $region30: #{tpu_custom_call.1} parent=5 // pred_check_branch
        %184 = sbr.rel (%p182) target = $region32
      $region31: #{tpu_custom_call.1} parent=5 // pred_region
        // Predicated region
        $region33: #{tpu_custom_call.1} parent=31 // pred_check
          %p185 = pneg %p38
        $region34: #{tpu_custom_call.1} parent=31 // pred_check_branch
          %187 = sbr.rel (%p185) target = $region36
        $region35: #{tpu_custom_call.1} parent=31 // pred_region
          %s188 = sand.u32 %s28, 1
          %s189 = scalar_lea.sflag [#allocation4], %s188
          %s190 = sand.u32 %s28, 1
          %s191 = smul.addr %s190, 16
          %s192 = scalar_lea.vmem [#allocation3], %s191
          %s194 = ssub.s32 256, 256
          %195 = vsyncadd %s189, %s194
          %s196 = smul.addr %s18, 128
          %s197 = scalar_lea.hbm %s0, %s196
          %s198 = sshll.u32 %s192, 4
          %s199 = int_to_ptr.vmem [resolvable:$true] %s198
          %204 = dma.hbm_to_vmem [thread:$0]  %s197, 256, %s199, %s189, 256, 128, 8
        $region36: #{tpu_custom_call.1} parent=31 // pred_fallthru
          _
      $region32: #{tpu_custom_call.1} parent=5 // pred_fallthru
        _
      %p205 = scmp.le.s32.totalorder 1, %s18
      %p206 = scmp.lt.s32.totalorder %s18, 3
      %p207 = pnand %p205, %p206
      %p208 = pneg %p207
      // Predicated region
      $region37: #{tpu_custom_call.1} parent=5 // pred_check
        _
      $region38: #{tpu_custom_call.1} parent=5 // pred_check_branch
        %210 = sbr.rel (%p207) target = $region40
      $region39: #{tpu_custom_call.1} parent=5 // pred_region
        %s211 = ssub.s32 %s18, 1
        %s212 = sand.u32 %s31, 1
        %s213 = scalar_lea.sflag [#allocation4], %s212
        %s214 = sand.u32 %s31, 1
        %s215 = smul.addr %s214, 16
        %s216 = scalar_lea.vmem [#allocation3], %s215
        // Predicated region
        $region41: #{tpu_custom_call.1} parent=39 // pred_check
          %p217 = pneg %p44
        $region42: #{tpu_custom_call.1} parent=39 // pred_check_branch
          %219 = sbr.rel (%p217) target = $region44
        $region43: #{tpu_custom_call.1} parent=39 // pred_region
          %220 = dma.done %s213, 256
        $region44: #{tpu_custom_call.1} parent=39 // pred_fallthru
          _
        %s221 = sand.u32 %s31, 1
        %s222 = scalar_lea.sflag [#allocation4], %s221
        %s223 = sand.u32 %s31, 1
        %s224 = smul.addr %s223, 16
        %s225 = scalar_lea.vmem [#allocation3], %s224
        %p226 = pneg %p44
        %p227 = pneg %p41
        %p228 = pneg %p65
        %p229 = pneg %p62
        %p230 = pneg %p86
        %p231 = pneg %p83
        %p232 = pneg %p107
        %p233 = pneg %p104
        %p234 = pneg %p128
        %p235 = pneg %p125
        %p236 = pneg %p154
        %p237 = pneg %p151
        %s238 = sand.u32 %s141, 1
        %s239 = scalar_lea.sflag [#allocation5], %s238
        %s240 = sand.u32 %s141, 1
        %s241 = scalar_lea.vmem [#allocation6], %s240
        %v242 = vld [vmem:[%s216] sm:$0xff]
        %v243 = vld [vmem:[%s216 + $0x8] sm:$0x1]
        %v244 = vld [vmem:[%s1] sm:$0x1f]
        %v245 = vld [vmem:[%s2] sm:$0x1f]
        %247 = vset.pattern.permute.xlu0 0
        %248 = vperm.xlu0 %247, %v245
        %v249 = vpop.permute.xlu0 %248
        %vm251 = vcmask 72704
        %v253 = vsel %vm251, %v244, 0
        %vm255 = vcmask 1040384
        %v257 = vsel %vm255, %v243, 0
        %259 = vmatprep.subr.mxu0 0.0
        %260 = vmatpush1.msra.mxu0 %v242
        %261 = vmatprep.subr.mxu0 0.0
        %262 = vmatpush1.msra.mxu0 %v257
        %263 = vmatprep.subr.mxu0 0.0
        %264 = vmatpush1.msra.mxu0 0.0
        %265 = vmatprep.subr.mxu0 0.0
        %266 = vmatpush1.msra.mxu0 0.0
        %267 = vmatprep.subr.mxu0 0.0
        %268 = vmatpush1.msra.mxu0 0.0
        %269 = vmatprep.subr.mxu0 0.0
        %270 = vmatpush1.msra.mxu0 0.0
        %271 = vmatprep.subr.mxu0 0.0
        %272 = vmatpush1.msra.mxu0 0.0
        %273 = vmatprep.subr.mxu0 0.0
        %274 = vmatpush1.msra.mxu0 0.0
        %275 = vmatprep.subr.mxu0 0.0
        %276 = vmatpush1.msra.mxu0 0.0
        %277 = vmatprep.subr.mxu0 0.0
        %278 = vmatpush1.msra.mxu0 0.0
        %279 = vmatprep.subr.mxu0 0.0
        %280 = vmatpush1.msra.mxu0 0.0
        %281 = vmatprep.subr.mxu0 0.0
        %282 = vmatpush1.msra.mxu0 0.0
        %283 = vmatprep.subr.mxu0 0.0
        %284 = vmatpush1.msra.mxu0 0.0
        %285 = vmatprep.subr.mxu0 0.0
        %286 = vmatpush1.msra.mxu0 0.0
        %287 = vmatprep.subr.mxu0 0.0
        %288 = vmatpush1.msra.mxu0 0.0
        %289 = vmatprep.subr.mxu0 0.0
        %290 = vmatpush1.msra.mxu0 0.0
        %291 = vmatprep.subr.mxu0 0.0
        %292 = vmatpush1.msra.mxu0 0.0
        %293 = vmatprep.subr.mxu0 0.0
        %294 = vmatpush1.msra.mxu0 0.0
        %295 = vmatprep.subr.mxu0 0.0
        %296 = vmatpush1.msra.mxu0 0.0
        %297 = vmatprep.subr.mxu0 0.0
        %298 = vmatpush1.msra.mxu0 0.0
        %299 = vmatprep.subr.mxu0 0.0
        %300 = vmatpush1.msra.mxu0 0.0
        %301 = vmatprep.subr.mxu0 0.0
        %302 = vmatpush1.msra.mxu0 0.0
        %303 = vmatprep.subr.mxu0 0.0
        %304 = vmatpush1.msra.mxu0 0.0
        %305 = vmatprep.subr.mxu0 0.0
        %306 = vmatpush1.msra.mxu0 0.0
        %307 = vmatprep.subr.mxu0 0.0
        %308 = vmatpush1.msra.mxu0 0.0
        %309 = vmatprep.subr.mxu0 0.0
        %310 = vmatpush1.msra.mxu0 0.0
        %311 = vmatprep.subr.mxu0 0.0
        %312 = vmatpush1.msra.mxu0 0.0
        %313 = vmatprep.subr.mxu0 0.0
        %314 = vmatpush1.msra.mxu0 0.0
        %315 = vmatprep.subr.mxu0 0.0
        %316 = vmatpush1.msra.mxu0 0.0
        %317 = vmatprep.subr.mxu0 0.0
        %318 = vmatpush1.msra.mxu0 0.0
        %319 = vmatprep.subr.mxu0 0.0
        %320 = vmatpush1.msra.mxu0 0.0
        %321 = vmatprep.subr.mxu0 0.0
        %322 = vmatpush1.msra.mxu0 0.0
        %323 = vmatprep.mubr.f32.mxu0 0.0
        %324 = vmatmul.mubr.f32.gmra.mrb[0].mxu0 %v253
        %v325 = vpop.f32.mrb[0].mxu0
        %v326 = vadd.f32 %v249, %v325
        %v327 = vpop.f32.mrb[0].mxu0
        %328 = vdwg.mxu0
        %v329 = vmax.f32 %v326, 0.0
        %v330 = vld [vmem:[%s3] sm:$0x1]
        %s331 = sld [smem:[#allocation2]]
        %v332 = vstv %s331
        %vm333 = vcmask 39936
        %v335 = vsel %vm333, %v330, 0
        %vm337 = vcmask 1044480
        %v339 = vsel %vm337, %v329, 0
        %341 = vmatprep.subr.mxu0 0.0
        %342 = vmatpush1.msra.mxu0 %v339
        %343 = vmatprep.subr.mxu0 0.0
        %344 = vmatpush1.msra.mxu0 0.0
        %345 = vmatprep.subr.mxu0 0.0
        %346 = vmatpush1.msra.mxu0 0.0
        %347 = vmatprep.subr.mxu0 0.0
        %348 = vmatpush1.msra.mxu0 0.0
        %349 = vmatprep.subr.mxu0 0.0
        %350 = vmatpush1.msra.mxu0 0.0
        %351 = vmatprep.subr.mxu0 0.0
        %352 = vmatpush1.msra.mxu0 0.0
        %353 = vmatprep.subr.mxu0 0.0
        %354 = vmatpush1.msra.mxu0 0.0
        %355 = vmatprep.subr.mxu0 0.0
        %356 = vmatpush1.msra.mxu0 0.0
        %357 = vmatprep.subr.mxu0 0.0
        %358 = vmatpush1.msra.mxu0 0.0
        %359 = vmatprep.subr.mxu0 0.0
        %360 = vmatpush1.msra.mxu0 0.0
        %361 = vmatprep.subr.mxu0 0.0
        %362 = vmatpush1.msra.mxu0 0.0
        %363 = vmatprep.subr.mxu0 0.0
        %364 = vmatpush1.msra.mxu0 0.0
        %365 = vmatprep.subr.mxu0 0.0
        %366 = vmatpush1.msra.mxu0 0.0
        %367 = vmatprep.subr.mxu0 0.0
        %368 = vmatpush1.msra.mxu0 0.0
        %369 = vmatprep.subr.mxu0 0.0
        %370 = vmatpush1.msra.mxu0 0.0
        %371 = vmatprep.subr.mxu0 0.0
        %372 = vmatpush1.msra.mxu0 0.0
        %373 = vmatprep.subr.mxu0 0.0
        %374 = vmatpush1.msra.mxu0 0.0
        %375 = vmatprep.subr.mxu0 0.0
        %376 = vmatpush1.msra.mxu0 0.0
        %377 = vmatprep.subr.mxu0 0.0
        %378 = vmatpush1.msra.mxu0 0.0
        %379 = vmatprep.subr.mxu0 0.0
        %380 = vmatpush1.msra.mxu0 0.0
        %381 = vmatprep.subr.mxu0 0.0
        %382 = vmatpush1.msra.mxu0 0.0
        %383 = vmatprep.subr.mxu0 0.0
        %384 = vmatpush1.msra.mxu0 0.0
        %385 = vmatprep.subr.mxu0 0.0
        %386 = vmatpush1.msra.mxu0 0.0
        %387 = vmatprep.subr.mxu0 0.0
        %388 = vmatpush1.msra.mxu0 0.0
        %389 = vmatprep.subr.mxu0 0.0
        %390 = vmatpush1.msra.mxu0 0.0
        %391 = vmatprep.subr.mxu0 0.0
        %392 = vmatpush1.msra.mxu0 0.0
        %393 = vmatprep.subr.mxu0 0.0
        %394 = vmatpush1.msra.mxu0 0.0
        %395 = vmatprep.subr.mxu0 0.0
        %396 = vmatpush1.msra.mxu0 0.0
        %397 = vmatprep.subr.mxu0 0.0
        %398 = vmatpush1.msra.mxu0 0.0
        %399 = vmatprep.subr.mxu0 0.0
        %400 = vmatpush1.msra.mxu0 0.0
        %401 = vmatprep.subr.mxu0 0.0
        %402 = vmatpush1.msra.mxu0 0.0
        %403 = vmatprep.subr.mxu0 0.0
        %404 = vmatpush1.msra.mxu0 0.0
        %405 = vmatprep.mubr.f32.mxu0 0.0
        %406 = vmatmul.mubr.f32.gmra.mrb[0].mxu0 %v335
        %v407 = vpop.f32.mrb[0].mxu0
        %v408 = vadd.f32 %v332, %v407
        %v409 = vpop.f32.mrb[0].mxu0
        %410 = vdwg.mxu0
        %411 = vst [vmem:[%s241] sm:$0x1] %v408
        %s412 = sand.u32 %s141, 1
        %s413 = scalar_lea.sflag [#allocation5], %s412
        %s414 = sand.u32 %s141, 1
        %s415 = scalar_lea.vmem [#allocation6], %s414
        // Predicated region
        $region45: #{tpu_custom_call.1} parent=39 // pred_check
          %p416 = pneg %p151
        $region46: #{tpu_custom_call.1} parent=39 // pred_check_branch
          %418 = sbr.rel (%p416) target = $region48
        $region47: #{tpu_custom_call.1} parent=39 // pred_region
          %s420 = ssub.s32 16, 16
          %421 = vsyncadd %s413, %s420
          %s422 = smul.addr %s23, 16
          %s423 = scalar_lea.hbm %s5, %s422
          %s425 = sshll.u32 %s415, 4
          %s426 = int_to_ptr.vmem [resolvable:$true] %s425
          %428 = dma.vmem_to_hbm [thread:$0]  %s426, 16, %s423, %s413
        $region48: #{tpu_custom_call.1} parent=39 // pred_fallthru
          _
      $region40: #{tpu_custom_call.1} parent=5 // pred_fallthru
        _
      %p429 = scmp.le.s32.totalorder 2, %s18
      // Predicated region
      $region49: #{tpu_custom_call.1} parent=5 // pred_check
        %p430 = pneg %p429
      $region50: #{tpu_custom_call.1} parent=5 // pred_check_branch
        %432 = sbr.rel (%p430) target = $region52
      $region51: #{tpu_custom_call.1} parent=5 // pred_region
        %s433 = ssub.s32 %s18, 2
        // Predicated region
        $region53: #{tpu_custom_call.1} parent=51 // pred_check
          %p434 = pneg %p157
        $region54: #{tpu_custom_call.1} parent=51 // pred_check_branch
          %436 = sbr.rel (%p434) target = $region56
        $region55: #{tpu_custom_call.1} parent=51 // pred_region
          %s437 = sand.u32 %s142, 1
          %s438 = scalar_lea.sflag [#allocation5], %s437
          %s439 = sand.u32 %s142, 1
          %s440 = scalar_lea.vmem [#allocation6], %s439
          %441 = dma.done %s438, 16
        $region56: #{tpu_custom_call.1} parent=51 // pred_fallthru
          _
      $region52: #{tpu_custom_call.1} parent=5 // pred_fallthru
        _
    $region6: #{tpu_custom_call.1} parent=1 // loop_footer
      %s22 = sadd.s32 1, %s18
    $region7: #{tpu_custom_call.1} parent=1 // loop_footer_branch
      %17 = sbr.rel target = $region3
    $region8: #{tpu_custom_call.1} parent=1 // loop_exit
      _
    %442 = vsyncpa [#allocation4], 1
    %s443 = scalar_lea.sflag [#allocation4], 1
    %444 = vsyncpa %s443, 1
    %445 = vsyncpa [#allocation5], 1
    %s446 = scalar_lea.sflag [#allocation5], 1
    %447 = vsyncpa %s446, 1

</llo_original>
